<compile_context>
chip_gen: v7x
topology: tpu7x:2x2x1
jax: 0.10.0
libtpu: 0.0.40
codegen_flags: <defaults>
</compile_context>

<pallas_src>
import jax
import jax.numpy as jnp
from jax.experimental import pallas as pl
from jax.experimental.pallas import tpu as pltpu

_NEG_BIG = -1e30     # finite "minus infinity" for padded logit lanes
_LANE = 128


# ------------------------------ helpers ---------------------------------
def _round_up(x, m):
    return (x + m - 1) // m * m


def _cdiv(a, b):
    return -(-a // b)


def _vmem_physical_bytes():
    """Per-core VMEM capacity; conservative (v7x) fallback if unknown."""
    try:
        cap = getattr(pltpu.get_tpu_info(), "vmem_capacity_bytes", None)
        if cap:
            return int(cap)
    except Exception:
        pass
    return 64 << 20


def _vmem_budget_bytes():
    return int(_vmem_physical_bytes() * 0.75)


def _step_vmem_bytes(tb, tk, d_out_p, w_elt, n_dense_out, out_elt):
    """Per-grid-step VMEM, counting Pallas' default double-buffering (2x)."""
    x_bytes = 2 * tb * tk * 4                        # x tile (f32 in HBM)
    wt_bytes = 2 * tk * d_out_p * w_elt              # W_T tile (double-buffered!)
    b_bytes = 2 * d_out_p * 4                        # bias
    out_bytes = 2 * tb * (n_dense_out * d_out_p * out_elt + 4)  # logits[,probs]+lse
    acc_bytes = tb * d_out_p * 4                     # f32 accumulator scratch
    return x_bytes + wt_bytes + b_bytes + out_bytes + acc_bytes


def _choose_batch_tile(B, tb_max, align, fits_fn):
    """Largest sublane-aligned B tile that fits VMEM, aiming for >=2 tiles."""
    target = _round_up(max(1, _cdiv(B, 2)), align)   # >=2 tiles -> both v7x TCs busy
    cap = _round_up(B, 8)                            # never a tile larger than the batch
    tb = max(8, min(tb_max, target, cap))
    tb -= tb % 8
    while tb > 8 and not fits_fn(tb):
        tb = max(8, tb - 8)
    return tb


# ------------------------------ kernels ---------------------------------
def _accumulate(x_ref, wt_ref, acc_ref):
    @pl.when(pl.program_id(1) == 0)
    def _():
        acc_ref[...] = jnp.zeros_like(acc_ref)

    # cast x to the (bf16) weight dtype in-register; accumulate in f32 on MXU
    acc_ref[...] += jnp.dot(x_ref[...].astype(wt_ref.dtype), wt_ref[...],
                            preferred_element_type=jnp.float32)


def _logits_lse_kernel(x_ref, wt_ref, b_ref, logits_ref, lse_ref, acc_ref):
    _accumulate(x_ref, wt_ref, acc_ref)

    @pl.when(pl.program_id(1) == pl.num_programs(1) - 1)
    def _():
        logits = acc_ref[...] + b_ref[...]           # padded lanes -> ~ -1e30
        logits_ref[...] = logits.astype(logits_ref.dtype)
        m = jnp.max(logits, axis=-1, keepdims=True)
        denom = jnp.sum(jnp.exp(logits - m), axis=-1, keepdims=True)
        lse_ref[...] = m + jnp.log(denom)            # log-sum-exp, [tb, 1] f32


def _logits_lse_probs_kernel(x_ref, wt_ref, b_ref,
                             logits_ref, lse_ref, probs_ref, acc_ref):
    _accumulate(x_ref, wt_ref, acc_ref)

    @pl.when(pl.program_id(1) == pl.num_programs(1) - 1)
    def _():
        logits = acc_ref[...] + b_ref[...]
        logits_ref[...] = logits.astype(logits_ref.dtype)
        m = jnp.max(logits, axis=-1, keepdims=True)
        e = jnp.exp(logits - m)                      # padded lanes -> exactly 0
        denom = jnp.sum(e, axis=-1, keepdims=True)
        lse_ref[...] = m + jnp.log(denom)
        probs_ref[...] = (e * pl.reciprocal(denom, approx=True)).astype(probs_ref.dtype)


# ------------------------------ wrappers ---------------------------------
def prepare_params(weight, bias, *, param_dtype=jnp.bfloat16,
                   max_weight_block_bytes=None):
    """One-time param prep: transpose + lane-pad the Linear params.

    weight: [d_out, d_in] (PyTorch nn.Linear convention), bias: [d_out].
    Returns (W_T [d_in_p, d_out_p], bias [1, d_out_p], k_tile).
    Padded output lanes get a huge negative bias so they never win a softmax.
    If 2x the weight (Pallas double-buffers inputs) would not fit the VMEM
    budget, d_in is padded (one time, with zeros) to a multiple of a
    128-aligned k_tile so the weight can be streamed along K instead.
    """
    d_out, d_in = weight.shape
    d_out_p = _round_up(d_out, _LANE)
    w_elt = jnp.dtype(param_dtype).itemsize
    if max_weight_block_bytes is None:
        max_weight_block_bytes = int(_vmem_budget_bytes() * 0.6)

    num_k = max(1, _cdiv(2 * d_in * d_out_p * w_elt, max_weight_block_bytes))
    if num_k == 1:
        k_tile, d_in_p = d_in, d_in                  # single resident W_T block
    else:
        k_tile = _round_up(_cdiv(d_in, num_k), _LANE)
        d_in_p = _round_up(d_in, k_tile)

    wt = jnp.zeros((d_in_p, d_out_p), jnp.float32)
    wt = wt.at[:d_in, :d_out].set(jnp.asarray(weight, jnp.float32).T)
    wt = wt.astype(param_dtype)

    b = jnp.full((1, d_out_p), _NEG_BIG, jnp.float32)
    b = b.at[0, :d_out].set(jnp.asarray(bias, jnp.float32))
    return wt, b, k_tile


def categorical_net_forward(x, wt_padded, bias_padded, k_tile=None, *,
                            return_probs=False, tb_max=2048,
                            out_dtype=jnp.float32):
    """Equivalent of CategoricalNet.forward (the distribution's sufficient stats).

    x:           [B, d_in] float32
    wt_padded:   [d_in_p, d_out_p]  (from prepare_params; bf16 or f32)
    bias_padded: [1, d_out_p] float32
    Returns lane-padded arrays (NOT sliced, see dist_* helpers):
        (logits [B, d_out_p], lse [B, 1])               if return_probs=False
        (logits, lse, probs [B, d_out_p])                if return_probs=True
    """
    B, d_in = x.shape
    d_in_p, d_out_p = wt_padded.shape
    if k_tile is None:
        k_tile = d_in_p
    num_k = d_in_p // k_tile
    assert k_tile * num_k == d_in_p, "k_tile must divide the padded d_in"

    # Only the (rare) K-streamed large-head path needs a contraction pad of x.
    if d_in_p != d_in:
        x = jnp.pad(x, ((0, 0), (0, d_in_p - d_in)))

    w_elt = jnp.dtype(wt_padded.dtype).itemsize
    out_elt = jnp.dtype(out_dtype).itemsize
    n_dense = 2 if return_probs else 1
    budget = _vmem_budget_bytes()

    def fits(tb):
        return _step_vmem_bytes(tb, k_tile, d_out_p, w_elt, n_dense, out_elt) <= budget

    align = 16 if min(w_elt, out_elt) < 4 else 8     # packed-sublane friendly under bf16
    tb = _choose_batch_tile(B, tb_max, align, fits)
    nb = _cdiv(B, tb)                                # ragged last tile: writes are masked

    needed = _step_vmem_bytes(tb, k_tile, d_out_p, w_elt, n_dense, out_elt)
    vmem_limit = int(min(_vmem_physical_bytes(), max(needed + (4 << 20), 32 << 20)))

    in_specs = [
        pl.BlockSpec((tb, k_tile), lambda i, k: (i, k)),       # streamed x tile
        pl.BlockSpec((k_tile, d_out_p), lambda i, k: (k, 0)),  # (resident) W_T tile
        pl.BlockSpec((1, d_out_p), lambda i, k: (0, 0)),       # resident bias
    ]
    dense_spec = pl.BlockSpec((tb, d_out_p), lambda i, k: (i, 0))
    lse_spec = pl.BlockSpec((tb, 1), lambda i, k: (i, 0))

    out_shapes = [jax.ShapeDtypeStruct((B, d_out_p), out_dtype),
                  jax.ShapeDtypeStruct((B, 1), jnp.float32)]
    out_specs = [dense_spec, lse_spec]
    kernel = _logits_lse_kernel
    if return_probs:
        out_shapes.append(jax.ShapeDtypeStruct((B, d_out_p), out_dtype))
        out_specs.append(dense_spec)
        kernel = _logits_lse_probs_kernel

    return pl.pallas_call(
        kernel,
        out_shape=tuple(out_shapes),
        grid_spec=pltpu.PrefetchScalarGridSpec(
            num_scalar_prefetch=0,
            grid=(nb, num_k),
            in_specs=in_specs,
            out_specs=out_specs,
            scratch_shapes=[pltpu.VMEM((tb, d_out_p), jnp.float32)],
        ),
        compiler_params=pltpu.CompilerParams(
            dimension_semantics=("parallel", "arbitrary"),
            vmem_limit_bytes=vmem_limit,
        ),
    )(x, wt_padded, bias_padded)


# ---------- CustomFixedCategorical equivalents (plain JAX glue) ----------
# All helpers consume the *lane-padded* kernel outputs directly; padded lanes
# carry logits ~ -1e30 so they never affect argmax / sampling / log-probs.
def dist_mode(logits):
    return jnp.argmax(logits, axis=-1, keepdims=True)


def dist_sample(key, logits):
    return jax.random.categorical(key, logits, axis=-1)[..., None]


def dist_get_probs(logits, lse):
    return jnp.exp(logits - lse)         # padded lanes underflow to exactly 0


def dist_get_log_probs(logits, lse):
    return logits - lse                  # log_softmax without an extra HBM pass


def dist_log_probs(logits, lse, actions):
    a = actions.squeeze(-1)
    g = jnp.take_along_axis(logits, a[:, None], axis=-1) - lse
    return g.reshape(actions.shape[0], -1).sum(-1, keepdims=True)


# ---------- deterministic parameter init (orthogonal, gain=0.01) ----------
def init_params(key, num_inputs, num_outputs):
    k_w, _ = jax.random.split(key)
    a = jax.random.normal(k_w, (num_outputs, num_inputs), dtype=jnp.float32)
    if num_outputs < num_inputs:
        q, r = jnp.linalg.qr(a.T)
        q = q * jnp.sign(jnp.diag(r))
        w = q.T[:num_outputs, :]
    else:
        q, r = jnp.linalg.qr(a)
        q = q * jnp.sign(jnp.diag(r))
        w = q[:, :num_inputs]
    w = 0.01 * w
    b = jnp.zeros((num_outputs,), dtype=jnp.float32)
    return w, b


if __name__ == "__main__":
    key = jax.random.PRNGKey(0)
    k_x, k_p, k_x2, k_p2 = jax.random.split(key, 4)

    # ---- test 1: small policy head, default bf16 params, logits+lse path ----
    B, num_inputs, num_outputs = 8, 32, 16
    x = jax.random.normal(k_x, (B, num_inputs), dtype=jnp.float32)
    weight, bias = init_params(k_p, num_inputs, num_outputs)

    wt_p, b_p, ktile = prepare_params(weight, bias)            # bf16 by default
    logits, lse = categorical_net_forward(x, wt_p, b_p, ktile)
    logits, lse = jax.block_until_ready((logits, lse))

    # reference with matching bf16 quantization (MXU is bf16; accumulate in f32)
    x_q = x.astype(jnp.bfloat16).astype(jnp.float32)
    w_q = weight.astype(jnp.bfloat16).astype(jnp.float32)
    ref_logits = x_q @ w_q.T + bias
    ref_lse = jax.scipy.special.logsumexp(ref_logits, axis=-1, keepdims=True)
    assert jnp.allclose(logits[:, :num_outputs], ref_logits, atol=1e-4, rtol=1e-4)
    assert jnp.allclose(lse, ref_lse, atol=1e-4, rtol=1e-4)
    # padded lanes -> exactly zero probability, so downstream never needs a slice
    assert jnp.all(dist_get_probs(logits, lse)[:, num_outputs:] == 0.0)

    # probs variant (EUP approx reciprocal -> slightly looser tolerance)
    _, _, probs = categorical_net_forward(x, wt_p, b_p, ktile, return_probs=True)
    probs = jax.block_until_ready(probs)
    ref_probs = jax.nn.softmax(ref_logits, axis=-1)
    assert jnp.allclose(probs[:, :num_outputs], ref_probs, atol=2e-3, rtol=2e-3)
    assert jnp.allclose(jnp.sum(probs, axis=-1), 1.0, atol=2e-3)

    # exact-precision f32 param path
    wt32, b32, kt32 = prepare_params(weight, bias, param_dtype=jnp.float32)
    logits32, lse32 = jax.block_until_ready(
        categorical_net_forward(x, wt32, b32, kt32))
    ref32 = x @ weight.T + bias
    assert jnp.allclose(logits32[:, :num_outputs], ref32, atol=1e-5, rtol=1e-5)

    # distribution helpers consume the lane-padded outputs directly
    mode = dist_mode(logits)
    lp = dist_log_probs(logits, lse, mode)
    samp = dist_sample(jax.random.PRNGKey(1), logits)
    glp = dist_get_log_probs(logits, lse)
    jax.block_until_ready((mode, lp, samp, glp))
    assert jnp.all(mode < num_outputs) and jnp.all(samp < num_outputs)
    assert jnp.allclose(lp, jnp.take_along_axis(jax.nn.log_softmax(ref_logits, -1),
                                                mode, axis=-1), atol=1e-3)

    # ---- test 2: K-streamed weight (forced) + ragged batch tiles ----
    B2, d_in2, d_out2 = 50, 256, 10
    x2 = jax.random.normal(k_x2, (B2, d_in2), dtype=jnp.float32)
    w2, bias2 = init_params(k_p2, d_in2, d_out2)
    wt2, bp2, kt2 = prepare_params(w2, bias2, param_dtype=jnp.float32,
                                   max_weight_block_bytes=128 * 1024)
    assert kt2 == 128                                  # two 128-wide K tiles
    l2, lse2 = jax.block_until_ready(categorical_net_forward(x2, wt2, bp2, kt2))
    ref2 = x2 @ w2.T + bias2
    assert jnp.allclose(l2[:, :d_out2], ref2, atol=1e-4, rtol=1e-4)
    assert jnp.allclose(lse2, jax.scipy.special.logsumexp(ref2, -1, keepdims=True),
                        atol=1e-4, rtol=1e-4)

    print("KERNEL_OK")
</pallas_src>

<mosaic_0001>
module attributes {stable_mosaic.version = 11 : i64} {
  func.func @_logits_lse_kernel(%arg0: i32, %arg1: i32, %arg2: memref<8x32xf32, #tpu.memory_space<vmem>>, %arg3: memref<32x128xbf16, #tpu.memory_space<vmem>>, %arg4: memref<1x128xf32, #tpu.memory_space<vmem>>, %arg5: memref<8x128xf32, #tpu.memory_space<vmem>>, %arg6: memref<8x1xf32, #tpu.memory_space<vmem>>, %arg7: memref<8x128xf32, #tpu.memory_space<vmem>>) attributes {dimension_semantics = [#tpu.dimension_semantics<parallel>, #tpu.dimension_semantics<arbitrary>], iteration_bounds = array<i64: 1, 1>, scalar_prefetch = 0 : i64, scratch_operands = 1 : i64, tpu.core_type = #tpu.core_type<tc>, window_params = [{transform_indices = @transform_0, window_bounds = array<i64: 8, 32>}, {transform_indices = @transform_1, window_bounds = array<i64: 32, 128>}, {pipeline_mode = #tpu.pipeline_mode<synchronous>, transform_indices = @transform_2, window_bounds = array<i64: 1, 128>}, {transform_indices = @transform_3, window_bounds = array<i64: 8, 128>}, {transform_indices = @transform_4, window_bounds = array<i64: 8, 1>}]} {
    %c0_i32 = arith.constant 0 : i32
    %0 = arith.cmpi eq, %arg1, %c0_i32 : i32
    %1 = arith.extui %0 : i1 to i32
    %c0_i32_0 = arith.constant 0 : i32
    %2 = arith.cmpi ne, %1, %c0_i32_0 : i32
    scf.if %2 {
      %cst_10 = arith.constant 0.000000e+00 : f32
      %13 = vector.broadcast %cst_10 : f32 to vector<8x128xf32>
      %c0_11 = arith.constant 0 : index
      %c0_12 = arith.constant 0 : index
      %14 = vector.load %arg7[%c0_11, %c0_12] : memref<8x128xf32, #tpu.memory_space<vmem>>, vector<8x128xf32>
      tpu.vector_store %arg7[%c0_11, %c0_12], %13 {strides = array<i32>} : memref<8x128xf32, #tpu.memory_space<vmem>>, vector<8x128xf32>,
    } else {
    }
    %c0 = arith.constant 0 : index
    %c0_1 = arith.constant 0 : index
    %3 = vector.load %arg7[%c0, %c0_1] : memref<8x128xf32, #tpu.memory_space<vmem>>, vector<8x128xf32>
    %c0_2 = arith.constant 0 : index
    %c0_3 = arith.constant 0 : index
    %4 = vector.load %arg2[%c0_2, %c0_3] : memref<8x32xf32, #tpu.memory_space<vmem>>, vector<8x32xf32>
    %5 = arith.truncf %4 : vector<8x32xf32> to vector<8x32xbf16>
    %c0_4 = arith.constant 0 : index
    %c0_5 = arith.constant 0 : index
    %6 = vector.load %arg3[%c0_4, %c0_5] : memref<32x128xbf16, #tpu.memory_space<vmem>>, vector<32x128xbf16>
    %cst = arith.constant dense<0.000000e+00> : vector<8x128xf32>
    %7 = tpu.matmul %5, %6, %cst {dimension_numbers = #tpu.dot_dimension_numbers<[1], [0], [0], [1], [0, 0, 1, 1], [], []>} : vector<8x32xbf16>, vector<32x128xbf16>, vector<8x128xf32> -> vector<8x128xf32>
    %8 = arith.addf %3, %7 : vector<8x128xf32>
    %c0_6 = arith.constant 0 : index
    %c0_7 = arith.constant 0 : index
    %9 = vector.load %arg7[%c0_6, %c0_7] : memref<8x128xf32, #tpu.memory_space<vmem>>, vector<8x128xf32>
    tpu.vector_store %arg7[%c0_6, %c0_7], %8 {strides = array<i32>} : memref<8x128xf32, #tpu.memory_space<vmem>>, vector<8x128xf32>,
    %c0_i32_8 = arith.constant 0 : i32
    %10 = arith.cmpi eq, %arg1, %c0_i32_8 : i32
    %11 = arith.extui %10 : i1 to i32
    %c0_i32_9 = arith.constant 0 : i32
    %12 = arith.cmpi ne, %11, %c0_i32_9 : i32
    scf.if %12 {
      %c0_10 = arith.constant 0 : index
      %c0_11 = arith.constant 0 : index
      %13 = vector.load %arg7[%c0_10, %c0_11] : memref<8x128xf32, #tpu.memory_space<vmem>>, vector<8x128xf32>
      %c0_12 = arith.constant 0 : index
      %c0_13 = arith.constant 0 : index
      %14 = vector.load %arg4[%c0_12, %c0_13] : memref<1x128xf32, #tpu.memory_space<vmem>>, vector<1x128xf32>
      %15 = vector.broadcast %14 : vector<1x128xf32> to vector<8x128xf32>
      %16 = arith.addf %13, %15 : vector<8x128xf32>
      %c0_14 = arith.constant 0 : index
      %c0_15 = arith.constant 0 : index
      %17 = vector.load %arg5[%c0_14, %c0_15] : memref<8x128xf32, #tpu.memory_space<vmem>>, vector<8x128xf32>
      tpu.vector_store %arg5[%c0_14, %c0_15], %16 {strides = array<i32>} : memref<8x128xf32, #tpu.memory_space<vmem>>, vector<8x128xf32>,
      %cst_16 = arith.constant dense<0xFF800000> : vector<8xf32>
      %18 = vector.multi_reduction <maximumf>, %16, %cst_16 [1] : vector<8x128xf32> to vector<8xf32>
      %19 = vector.shape_cast %18 : vector<8xf32> to vector<8x1xf32>
      %20 = vector.broadcast %19 : vector<8x1xf32> to vector<8x128xf32>
      %21 = arith.subf %16, %20 : vector<8x128xf32>
      %22 = math.exp %21 : vector<8x128xf32>
      %cst_17 = arith.constant dense<0.000000e+00> : vector<8xf32>
      %23 = vector.multi_reduction <add>, %22, %cst_17 [1] : vector<8x128xf32> to vector<8xf32>
      %24 = vector.shape_cast %23 : vector<8xf32> to vector<8x1xf32>
      %25 = math.log %24 : vector<8x1xf32>
      %26 = arith.addf %19, %25 : vector<8x1xf32>
      %c0_18 = arith.constant 0 : index
      %c0_19 = arith.constant 0 : index
      %27 = vector.load %arg6[%c0_18, %c0_19] : memref<8x1xf32, #tpu.memory_space<vmem>>, vector<8x1xf32>
      tpu.vector_store %arg6[%c0_18, %c0_19], %26 {strides = array<i32>} : memref<8x1xf32, #tpu.memory_space<vmem>>, vector<8x1xf32>,
    } else {
    }
    return
  }
  func.func @transform_0(%arg0: i32, %arg1: i32) -> (i32, i32) {
    %c0_i32 = arith.constant 0 : i32
    return %arg0, %arg1 : i32, i32
  }
  func.func @transform_1(%arg0: i32, %arg1: i32) -> (i32, i32) {
    %c0_i32 = arith.constant 0 : i32
    %c0_i32_0 = arith.constant 0 : i32
    return %arg1, %c0_i32 : i32, i32
  }
  func.func @transform_2(%arg0: i32, %arg1: i32) -> (i32, i32) {
    %c0_i32 = arith.constant 0 : i32
    %c0_i32_0 = arith.constant 0 : i32
    %c0_i32_1 = arith.constant 0 : i32
    return %c0_i32, %c0_i32_0 : i32, i32
  }
  func.func @transform_3(%arg0: i32, %arg1: i32) -> (i32, i32) {
    %c0_i32 = arith.constant 0 : i32
    %c0_i32_0 = arith.constant 0 : i32
    return %arg0, %c0_i32 : i32, i32
  }
  func.func @transform_4(%arg0: i32, %arg1: i32) -> (i32, i32) {
    %c0_i32 = arith.constant 0 : i32
    %c0_i32_0 = arith.constant 0 : i32
    return %arg0, %c0_i32 : i32, i32
  }
}

</mosaic_0001>

<llo_original>
// kernel: tpu_custom_call.1
$region0: #{tpu_custom_call.1}
  #allocation0 [shape = 'u32[]', space=smem, size = 0x4, offset = 0x4, fixed_abs, tag = 'smem constant byte address 0x4 - core index']
  #allocation1 [shape = 'u32[144,128]{1,0:T(1,128)}', space=vmem, size = 0x12000, scoped, tag = 'internal scratch']
  #allocation2 [shape = 'f32[8,128]{1,0:T(8,128)}', space=vmem, size = 0x1000, scoped, tag = 'scratch operand']
  %s0 = inlined_call_operand.hbm [shape: f32[8,32], index: 0, kind: input, shape index: {}]
  %s1 = inlined_call_operand.hbm [shape: bf16[32,128], index: 1, kind: input, shape index: {}]
  %s2 = inlined_call_operand.vmem [shape: f32[1,128], index: 2, kind: input, shape index: {}]
  %s3 = inlined_call_operand.hbm [shape: f32[8,128], index: 3, kind: output, shape index: {0}]
  %s4 = inlined_call_operand.vmem [shape: f32[8,1], index: 4, kind: output, shape index: {1}]
  %5 = xla_tuple %s3, %s4
  %s6 = sld [smem:[#allocation0]]
  $region46: #{tpu_custom_call.1} parent=0
    _
  %s8 = ssub.s32 1, %s6
  %s9 = scalar_select 0, %s8, %s6
  $region1: #{tpu_custom_call.1} parent=0
    #allocation3 [shape = 'u8[4096]{0}', space=vmem, size = 0x1000, scoped, tag = 'input window, operand 0, single buffered']
    #allocation4 [shape = 's32[1]{0}', space=sflag, size = 0x4, scoped, tag = 'scoped memory for tpu_custom_call.1']
    #allocation5 [shape = 's32[1]{0}', space=sflag, size = 0x4, scoped, tag = 'scoped memory for tpu_custom_call.1']
    #allocation6 [shape = 'u8[8192]{0}', space=vmem, size = 0x2000, scoped, tag = 'input window, operand 1, single buffered']
    #allocation7 [shape = 's32[1]{0}', space=sflag, size = 0x4, scoped, tag = 'scoped memory for tpu_custom_call.1']
    #allocation8 [shape = 'u8[4096]{0}', space=vmem, size = 0x1000, scoped, tag = 'output window, operand 0, single buffered']
    %10 = vsyncpa [#allocation4], 0
    %11 = vsyncpa [#allocation7], 0
    %12 = vsyncpa [#allocation5], 0
    // Predicated region
    $region2: #{tpu_custom_call.1} parent=1 // pred_check
      _
    $region3: #{tpu_custom_call.1} parent=1 // pred_check_branch
      %14 = sbr.rel (0) target = $region5
    $region4: #{tpu_custom_call.1} parent=1 // pred_region
      %s16 = ssub.s32 128, 128
      %17 = vsyncadd [#allocation4], %s16
      %s19 = sshll.u32 [#allocation3], 4
      %s20 = int_to_ptr.vmem [resolvable:$true] %s19
      %22 = dma.hbm_to_vmem [thread:$0]  %s0, 128, %s20, [#allocation4]
    $region5: #{tpu_custom_call.1} parent=1 // pred_fallthru
      _
    // Predicated region
    $region6: #{tpu_custom_call.1} parent=1 // pred_check
      _
    $region7: #{tpu_custom_call.1} parent=1 // pred_check_branch
      %24 = sbr.rel (0) target = $region9
    $region8: #{tpu_custom_call.1} parent=1 // pred_region
      %s26 = ssub.s32 256, 256
      %27 = vsyncadd [#allocation7], %s26
      %s28 = sshll.u32 [#allocation6], 4
      %s29 = int_to_ptr.vmem [resolvable:$true] %s28
      %34 = dma.hbm_to_vmem [thread:$0]  %s1, 256, %s29, [#allocation7], 64, 64, 4
    $region9: #{tpu_custom_call.1} parent=1 // pred_fallthru
      _
    // Predicated region
    $region10: #{tpu_custom_call.1} parent=1 // pred_check
      _
    $region11: #{tpu_custom_call.1} parent=1 // pred_check_branch
      %36 = sbr.rel (0) target = $region13
    $region12: #{tpu_custom_call.1} parent=1 // pred_region
      _
    $region13: #{tpu_custom_call.1} parent=1 // pred_fallthru
      _
    // Predicated region
    $region14: #{tpu_custom_call.1} parent=1 // pred_check
      _
    $region15: #{tpu_custom_call.1} parent=1 // pred_check_branch
      %38 = sbr.rel (0) target = $region17
    $region16: #{tpu_custom_call.1} parent=1 // pred_region
      %39 = dma.done [#allocation4], 128
    $region17: #{tpu_custom_call.1} parent=1 // pred_fallthru
      _
    // Predicated region
    $region18: #{tpu_custom_call.1} parent=1 // pred_check
      _
    $region19: #{tpu_custom_call.1} parent=1 // pred_check_branch
      %41 = sbr.rel (0) target = $region21
    $region20: #{tpu_custom_call.1} parent=1 // pred_region
      %42 = dma.done [#allocation7], 256
    $region21: #{tpu_custom_call.1} parent=1 // pred_fallthru
      _
    %p44 = scmp.eq.s32.totalorder 0, 0
    // Predicated region
    $region22: #{tpu_custom_call.1} parent=1 // pred_check
      %p45 = pneg %p44
    $region23: #{tpu_custom_call.1} parent=1 // pred_check_branch
      %47 = sbr.rel (%p45) target = $region25
    $region24: #{tpu_custom_call.1} parent=1 // pred_region
      %48 = vst [vmem:[#allocation2] sm:$0xff] 0.0
    $region25: #{tpu_custom_call.1} parent=1 // pred_fallthru
      _
    %v49 = vld [vmem:[#allocation2] sm:$0xff]
    %v50 = vld [vmem:[#allocation3] sm:$0xff]
    %v51 = vpack.c.bf16 %v50, %v50
    %v52 = vld [vmem:[#allocation6] sm:$0xf]
    %v53 = vld [vmem:[#allocation6 + $0x4] sm:$0xf]
    %v54 = vld [vmem:[#allocation6 + $0x8] sm:$0xf]
    %v55 = vld [vmem:[#allocation6 + $0xc] sm:$0xf]
    %v60 = vunpack.c.l.b16 %v52
    %v61 = vunpack.c.l.b16 %v53
    %v62 = vunpack.c.l.b16 %v54
    %v63 = vunpack.c.l.b16 %v55
    %v64 = vpack.c.b16 %v61, %v60
    %v65 = vpack.c.b16 %v63, %v62
    %vm68 = vcmask 261120
    %v70 = vsel %vm68, %v51, 0
    %72 = vmatprep.subr.bf16.mxu0 0
    %73 = vmatpush1.bf16.msra.mxu0 %v64
    %74 = vmatprep.subr.bf16.mxu0 0
    %75 = vmatpush1.bf16.msra.mxu0 %v65
    %76 = vmatprep.subr.bf16.mxu0 0
    %77 = vmatpush1.bf16.msra.mxu0 0
    %78 = vmatprep.subr.bf16.mxu0 0
    %79 = vmatpush1.bf16.msra.mxu0 0
    %80 = vmatprep.subr.bf16.mxu0 0
    %81 = vmatpush1.bf16.msra.mxu0 0
    %82 = vmatprep.subr.bf16.mxu0 0
    %83 = vmatpush1.bf16.msra.mxu0 0
    %84 = vmatprep.subr.bf16.mxu0 0
    %85 = vmatpush1.bf16.msra.mxu0 0
    %86 = vmatprep.subr.bf16.mxu0 0
    %87 = vmatpush1.bf16.msra.mxu0 0
    %88 = vmatprep.subr.bf16.mxu0 0
    %89 = vmatpush1.bf16.msra.mxu0 0
    %90 = vmatprep.subr.bf16.mxu0 0
    %91 = vmatpush1.bf16.msra.mxu0 0
    %92 = vmatprep.subr.bf16.mxu0 0
    %93 = vmatpush1.bf16.msra.mxu0 0
    %94 = vmatprep.subr.bf16.mxu0 0
    %95 = vmatpush1.bf16.msra.mxu0 0
    %96 = vmatprep.subr.bf16.mxu0 0
    %97 = vmatpush1.bf16.msra.mxu0 0
    %98 = vmatprep.subr.bf16.mxu0 0
    %99 = vmatpush1.bf16.msra.mxu0 0
    %100 = vmatprep.subr.bf16.mxu0 0
    %101 = vmatpush1.bf16.msra.mxu0 0
    %102 = vmatprep.subr.bf16.mxu0 0
    %103 = vmatpush1.bf16.msra.mxu0 0
    %104 = vmatprep.mubr.bf16.mxu0 0
    %105 = vmatmul.mubr.bf16.gmra.mrb[0].mxu0 %v70
    %v106 = vpop.f32.mrb[0].mxu0
    %v107 = vadd.f32 0.0, %v106
    %v108 = vpop.f32.mrb[0].mxu0
    %v109 = vpop.f32.mrb[0].mxu0
    %v110 = vpop.f32.mrb[0].mxu0
    %111 = vdwg.mxu0
    %v112 = vadd.f32 %v49, %v107
    %113 = vst [vmem:[#allocation2] sm:$0xff] %v112
    // Predicated region
    $region26: #{tpu_custom_call.1} parent=1 // pred_check
      %p114 = pneg %p44
    $region27: #{tpu_custom_call.1} parent=1 // pred_check_branch
      %116 = sbr.rel (%p114) target = $region29
    $region28: #{tpu_custom_call.1} parent=1 // pred_region
      %v117 = vld [vmem:[#allocation2] sm:$0xff]
      %v118 = vld [vmem:[%s2] sm:$0x1]
      %v120 = vlaneseq
      %v121 = vshrl.u32 %v120, 7
      %v122 = vsub.s32 0, %v121
      %v123 = vrot.slane %v118, %v122
      %v125 = vadd.f32 %v117, %v123
      %126 = vst [vmem:[#allocation8] sm:$0xff] %v125
      %127 = vmax.xlane.f32.xlu0 %v125
      %v128 = vpop.xlane.xlu0 %127
      %v129 = vsub.f32 %v125, %v128
      %v130 = vmul.f32 %v129, 1.442695
      %v131 = vpow.pop %v130
      %132 = vadd.xlane.f32.xlu0 %v131
      %v133 = vpop.xlane.xlu0 %132
      %v134 = vlog2.pop %v133
      %v135 = vmul.f32 %v134, 0.6931472
      %v136 = vadd.f32 %v128, %v135
      %vm137 = vcmask 7168
      %138 = vst.msk [vmem:[%s4] sm:$0xff] %vm137, %v136
    $region29: #{tpu_custom_call.1} parent=1 // pred_fallthru
      _
    // Predicated region
    $region30: #{tpu_custom_call.1} parent=1 // pred_check
      _
    $region31: #{tpu_custom_call.1} parent=1 // pred_check_branch
      %140 = sbr.rel (0) target = $region33
    $region32: #{tpu_custom_call.1} parent=1 // pred_region
      %s142 = ssub.s32 128, 128
      %143 = vsyncadd [#allocation5], %s142
      %s145 = sshll.u32 [#allocation8], 4
      %s146 = int_to_ptr.vmem [resolvable:$true] %s145
      %148 = dma.vmem_to_hbm [thread:$0]  %s146, 128, %s3, [#allocation5]
    $region33: #{tpu_custom_call.1} parent=1 // pred_fallthru
      _
    // Predicated region
    $region34: #{tpu_custom_call.1} parent=1 // pred_check
      _
    $region35: #{tpu_custom_call.1} parent=1 // pred_check_branch
      %150 = sbr.rel (0) target = $region37
    $region36: #{tpu_custom_call.1} parent=1 // pred_region
      _
    $region37: #{tpu_custom_call.1} parent=1 // pred_fallthru
      _
    // Predicated region
    $region38: #{tpu_custom_call.1} parent=1 // pred_check
      _
    $region39: #{tpu_custom_call.1} parent=1 // pred_check_branch
      %152 = sbr.rel (0) target = $region41
    $region40: #{tpu_custom_call.1} parent=1 // pred_region
      %153 = dma.done [#allocation5], 128
    $region41: #{tpu_custom_call.1} parent=1 // pred_fallthru
      _
    // Predicated region
    $region42: #{tpu_custom_call.1} parent=1 // pred_check
      _
    $region43: #{tpu_custom_call.1} parent=1 // pred_check_branch
      %155 = sbr.rel (0) target = $region45
    $region44: #{tpu_custom_call.1} parent=1 // pred_region
      _
    $region45: #{tpu_custom_call.1} parent=1 // pred_fallthru
      _
    %156 = vsyncpa [#allocation4], 1
    %157 = vsyncpa [#allocation7], 1
    %158 = vsyncpa [#allocation5], 1

</llo_original>
